<compile_context>
chip_gen: v7x
topology: tpu7x:2x2x1
jax: 0.10.0
libtpu: 0.0.40
codegen_flags: <defaults>
</compile_context>

<pallas_src>
import functools

import jax
import jax.numpy as jnp
from jax.experimental import pallas as pl
from jax.experimental.pallas import tpu as pltpu

EPS = float(jnp.finfo(jnp.float32).eps)   # torch.finfo(torch.float32).eps
CLAMP_MIN = 1e-7


def _round_up(x, m):
    return (x + m - 1) // m * m


def _hann_window_padded(win_length, n_fft):
    # torch.hann_window default is periodic=True; torch.stft centers it in n_fft.
    n = jnp.arange(win_length, dtype=jnp.float32)
    w = 0.5 * (1.0 - jnp.cos(2.0 * jnp.pi * n / win_length))
    lpad = (n_fft - win_length) // 2
    rpad = n_fft - win_length - lpad
    return jnp.pad(w, (lpad, rpad))


def _windowed_dft_basis(n_fft, win_length, f_pad):
    """(n_fft, 2*f_pad) = [window*cos | window*(-sin)], zero-padded to f_pad lanes.

    Window is folded into the bases: (x*w) @ C == x @ (diag(w) C).
    Sign of the imaginary basis is irrelevant for magnitudes.
    """
    F = n_fft // 2 + 1
    w = _hann_window_padded(win_length, n_fft)[:, None]          # (n_fft, 1)
    n = jnp.arange(n_fft, dtype=jnp.float32)[:, None]
    k = jnp.arange(F, dtype=jnp.float32)[None, :]
    ang = 2.0 * jnp.pi * n * k / float(n_fft)
    cos_w = w * jnp.cos(ang)
    sin_w = w * (-jnp.sin(ang))
    pad = ((0, 0), (0, f_pad - F))
    return jnp.concatenate([jnp.pad(cos_w, pad), jnp.pad(sin_w, pad)], axis=1)


def _frame(x2d, n_fft, hop_length):
    # torch.stft center=True -> reflect pad by n_fft//2 on each side, hop windows.
    # TODO(synk): this still materializes an (n_fft/hop)x-inflated framed tensor in
    # HBM; removing it needs manual in-kernel DMA of overlapping signal segments.
    pad = n_fft // 2
    xp = jnp.pad(x2d, ((0, 0), (pad, pad)), mode="reflect")
    t_pad = xp.shape[-1]
    n_frames = 1 + (t_pad - n_fft) // hop_length
    starts = jnp.arange(n_frames) * hop_length
    idx = starts[:, None] + jnp.arange(n_fft)[None, :]
    return xp[:, idx]                                    # (B*C, n_frames, n_fft)


def _stft_loss_kernel(z_ref, basis_ref, out_ref, *, n_bins, n_frames, tile_frames):
    """One (B*C row, frame-tile) step: fused DFT matmul, magnitudes, partial sums."""
    tf = tile_frames
    n_fft = z_ref.shape[-1]
    f_pad = basis_ref.shape[-1] // 2

    # (1, 1, 2*TF, n_fft) -> (2*TF, n_fft); window already folded into the basis.
    z = z_ref[...].reshape(2 * tf, n_fft)
    res = jnp.dot(z, basis_ref[...], preferred_element_type=jnp.float32)

    xr = res[:tf, :f_pad]
    xi = res[:tf, f_pad:]
    yr = res[tf:, :f_pad]
    yi = res[tf:, f_pad:]

    x_mag = jnp.sqrt(jnp.maximum(xr * xr + xi * xi, CLAMP_MIN))
    y_mag = jnp.sqrt(jnp.maximum(yr * yr + yi * yi, CLAMP_MIN))

    # Mask padded frequency lanes (>= n_bins) and padded frame rows (>= n_frames).
    lane = jax.lax.broadcasted_iota(jnp.int32, (tf, f_pad), 1)
    row = jax.lax.broadcasted_iota(jnp.int32, (tf, f_pad), 0) + pl.program_id(1) * tf
    vm = ((lane < n_bins) & (row < n_frames)).astype(jnp.float32)

    diff = y_mag - x_mag
    # log(e+y) - log(e+x) == log((e+y) / (e+x)); approx recip runs on the EUP.
    log_ratio = jnp.log((EPS + y_mag) * pl.reciprocal(EPS + x_mag, approx=True))

    s_sq_diff = jnp.sum(diff * diff * vm)
    s_sq_y = jnp.sum(y_mag * y_mag * vm)
    s_abs_log = jnp.sum(jnp.abs(log_ratio) * vm)

    # Lane-dense partial-sum tile: sublane 0 -> s_sq_diff, 1 -> s_sq_y, 2 -> s_abs_log.
    sub = jax.lax.broadcasted_iota(jnp.int32, (8, 128), 0)
    tile = (s_sq_diff * (sub == 0).astype(jnp.float32)
            + s_sq_y * (sub == 1).astype(jnp.float32)
            + s_abs_log * (sub == 2).astype(jnp.float32))
    out_ref[...] = tile.reshape(1, 1, 8, 128)


def stft_loss(x, y, *, n_fft=1024, hop_length=120, win_length=600,
              factor_sc=0.1, factor_mag=0.1, matmul_dtype=jnp.float32):
    """Equivalent of STFTLoss.forward(x, y) -> scalar."""
    B, C, T = x.shape
    BC = B * C
    F = n_fft // 2 + 1
    f_pad = _round_up(F, 128)

    xf = _frame(x.reshape(BC, T).astype(jnp.float32), n_fft, hop_length)
    yf = _frame(y.reshape(BC, T).astype(jnp.float32), n_fft, hop_length)
    n_frames = xf.shape[1]

    # Frame-tile size: multiple of 8, capped (v5e-friendly); pad frame count to a
    # whole number of tiles with zero frames (masked out inside the kernel).
    tile_frames = min(128, _round_up(n_frames, 8))
    nf_pad = _round_up(n_frames, tile_frames)
    n_tiles = nf_pad // tile_frames

    pad_rows = ((0, 0), (0, nf_pad - n_frames), (0, 0))
    xs = jnp.pad(xf, pad_rows).reshape(BC, n_tiles, tile_frames, n_fft)
    ys = jnp.pad(yf, pad_rows).reshape(BC, n_tiles, tile_frames, n_fft)
    frames = jnp.concatenate([xs, ys], axis=2).astype(matmul_dtype)
    # frames: (BC, n_tiles, 2*tile_frames, n_fft)

    basis = _windowed_dft_basis(n_fft, win_length, f_pad).astype(matmul_dtype)

    itemsize = jnp.dtype(matmul_dtype).itemsize
    vmem_est = (2 * 2 * tile_frames * n_fft * itemsize        # frames block x2 buffers
                + 2 * n_fft * 2 * f_pad * itemsize            # basis x2 buffers
                + (2 * tile_frames) * (2 * f_pad) * 4         # matmul result (f32)
                + 8 * tile_frames * f_pad * 4)                # elementwise temps (f32)
    vmem_limit = int(min(max(2 * vmem_est, 32 * 2**20), 56 * 2**20))

    kernel = functools.partial(_stft_loss_kernel, n_bins=F, n_frames=n_frames,
                               tile_frames=tile_frames)

    partials = pl.pallas_call(
        kernel,
        out_shape=jax.ShapeDtypeStruct((BC, n_tiles, 8, 128), jnp.float32),
        grid_spec=pltpu.PrefetchScalarGridSpec(
            num_scalar_prefetch=0,
            grid=(BC, n_tiles),
            in_specs=[
                pl.BlockSpec((1, 1, 2 * tile_frames, n_fft),
                             lambda i, j: (i, j, 0, 0)),
                pl.BlockSpec((n_fft, 2 * f_pad), lambda i, j: (0, 0)),
            ],
            out_specs=pl.BlockSpec((1, 1, 8, 128), lambda i, j: (i, j, 0, 0)),
        ),
        compiler_params=pltpu.CompilerParams(
            dimension_semantics=("parallel", "parallel"),
            vmem_limit_bytes=vmem_limit,
        ),
    )(frames, basis)

    red = jnp.sum(partials, axis=(0, 1))          # (8, 128)
    sum_sq_diff = red[0, 0]
    sum_sq_y = red[1, 0]
    sum_abs_logdiff = red[2, 0]

    sc_loss = jnp.sqrt(sum_sq_diff) / (jnp.sqrt(sum_sq_y) + EPS)
    mag_loss = sum_abs_logdiff / jnp.float32(BC * n_frames * F)
    return factor_sc * sc_loss + factor_mag * mag_loss


if __name__ == "__main__":
    # Small, consistent shapes: B=2, C=2, T=256 with a scaled-down STFT config
    # (STFTLoss takes these as constructor args; defaults would need T > 512).
    B, C, T = 2, 2, 256
    n_fft, hop_length, win_length = 128, 32, 96

    key = jax.random.PRNGKey(0)
    kx, ky = jax.random.split(key)
    x = jax.random.normal(kx, (B, C, T), dtype=jnp.float32)
    y = jax.random.normal(ky, (B, C, T), dtype=jnp.float32)

    out = stft_loss(x, y, n_fft=n_fft, hop_length=hop_length,
                    win_length=win_length, factor_sc=0.1, factor_mag=0.1)
    jax.block_until_ready(out)
    print("KERNEL_OK")
</pallas_src>

<mosaic_0001>
module attributes {stable_mosaic.version = 11 : i64} {
  func.func @_stft_loss_kernel(%arg0: i32, %arg1: i32, %arg2: memref<1x1x32x128xf32, #tpu.memory_space<vmem>>, %arg3: memref<128x256xf32, #tpu.memory_space<vmem>>, %arg4: memref<1x1x8x128xf32, #tpu.memory_space<vmem>>) attributes {dimension_semantics = [#tpu.dimension_semantics<parallel>, #tpu.dimension_semantics<parallel>], iteration_bounds = array<i64: 4, 1>, scalar_prefetch = 0 : i64, scratch_operands = 0 : i64, tpu.core_type = #tpu.core_type<tc>, window_params = [{transform_indices = @transform_0, window_bounds = array<i64: 1, 1, 32, 128>}, {pipeline_mode = #tpu.pipeline_mode<synchronous>, transform_indices = @transform_1, window_bounds = array<i64: 128, 256>}, {transform_indices = @transform_2, window_bounds = array<i64: 1, 1, 8, 128>}]} {
    %c0 = arith.constant 0 : index
    %c0_0 = arith.constant 0 : index
    %c0_1 = arith.constant 0 : index
    %c0_2 = arith.constant 0 : index
    %0 = vector.load %arg2[%c0, %c0_0, %c0_1, %c0_2] : memref<1x1x32x128xf32, #tpu.memory_space<vmem>>, vector<1x1x32x128xf32>
    %1 = vector.shape_cast %0 : vector<1x1x32x128xf32> to vector<32x128xf32>
    %c0_3 = arith.constant 0 : index
    %c0_4 = arith.constant 0 : index
    %2 = vector.load %arg3[%c0_3, %c0_4] : memref<128x256xf32, #tpu.memory_space<vmem>>, vector<128x256xf32>
    %cst = arith.constant dense<0.000000e+00> : vector<32x256xf32>
    %3 = tpu.matmul %1, %2, %cst {dimension_numbers = #tpu.dot_dimension_numbers<[1], [0], [0], [1], [0, 0, 1, 1], [], []>} : vector<32x128xf32>, vector<128x256xf32>, vector<32x256xf32> -> vector<32x256xf32>
    %4 = vector.extract_strided_slice %3 {offsets = [0, 0], sizes = [16, 128], strides = [1, 1]} : vector<32x256xf32> to vector<16x128xf32>
    %5 = vector.extract_strided_slice %3 {offsets = [0, 128], sizes = [16, 128], strides = [1, 1]} : vector<32x256xf32> to vector<16x128xf32>
    %6 = vector.extract_strided_slice %3 {offsets = [16, 0], sizes = [16, 128], strides = [1, 1]} : vector<32x256xf32> to vector<16x128xf32>
    %7 = vector.extract_strided_slice %3 {offsets = [16, 128], sizes = [16, 128], strides = [1, 1]} : vector<32x256xf32> to vector<16x128xf32>
    %8 = arith.mulf %4, %4 : vector<16x128xf32>
    %9 = arith.mulf %5, %5 : vector<16x128xf32>
    %10 = arith.addf %8, %9 : vector<16x128xf32>
    %cst_5 = arith.constant 1.000000e-07 : f32
    %11 = vector.broadcast %cst_5 : f32 to vector<16x128xf32>
    %12 = arith.maximumf %10, %11 : vector<16x128xf32>
    %13 = math.sqrt %12 : vector<16x128xf32>
    %14 = arith.mulf %6, %6 : vector<16x128xf32>
    %15 = arith.mulf %7, %7 : vector<16x128xf32>
    %16 = arith.addf %14, %15 : vector<16x128xf32>
    %cst_6 = arith.constant 1.000000e-07 : f32
    %17 = vector.broadcast %cst_6 : f32 to vector<16x128xf32>
    %18 = arith.maximumf %16, %17 : vector<16x128xf32>
    %19 = math.sqrt %18 : vector<16x128xf32>
    %20 = tpu.iota {dimensions = array<i32: 1>} : vector<16x128xi32>
    %21 = tpu.iota {dimensions = array<i32: 0>} : vector<16x128xi32>
    %c16_i32 = arith.constant 16 : i32
    %22 = arith.muli %arg1, %c16_i32 : i32
    %23 = vector.broadcast %22 : i32 to vector<16x128xi32>
    %24 = arith.addi %21, %23 : vector<16x128xi32>
    %c65_i32 = arith.constant 65 : i32
    %25 = vector.broadcast %c65_i32 : i32 to vector<16x128xi32>
    %26 = arith.cmpi slt, %20, %25 : vector<16x128xi32>
    %c9_i32 = arith.constant 9 : i32
    %27 = vector.broadcast %c9_i32 : i32 to vector<16x128xi32>
    %28 = arith.cmpi slt, %24, %27 : vector<16x128xi32>
    %29 = arith.andi %26, %28 : vector<16x128xi1>
    %30 = arith.extui %29 : vector<16x128xi1> to vector<16x128xi32>
    %31 = arith.sitofp %30 : vector<16x128xi32> to vector<16x128xf32>
    %32 = arith.subf %19, %13 : vector<16x128xf32>
    %cst_7 = arith.constant 1.1920929E-7 : f32
    %33 = vector.broadcast %cst_7 : f32 to vector<16x128xf32>
    %34 = arith.addf %33, %19 : vector<16x128xf32>
    %cst_8 = arith.constant 1.1920929E-7 : f32
    %35 = vector.broadcast %cst_8 : f32 to vector<16x128xf32>
    %36 = arith.addf %35, %13 : vector<16x128xf32>
    %37 = tpu.reciprocal %36 {approx = true} : vector<16x128xf32> -> vector<16x128xf32>
    %38 = arith.mulf %34, %37 : vector<16x128xf32>
    %39 = math.log %38 : vector<16x128xf32>
    %40 = arith.mulf %32, %32 : vector<16x128xf32>
    %41 = arith.mulf %40, %31 : vector<16x128xf32>
    %42 = vector.shape_cast %41 : vector<16x128xf32> to vector<1x16x128xf32>
    %cst_9 = arith.constant dense<0.000000e+00> : vector<1xf32>
    %43 = vector.multi_reduction <add>, %42, %cst_9 [1, 2] : vector<1x16x128xf32> to vector<1xf32>
    %44 = vector.shape_cast %43 : vector<1xf32> to vector<1x1x1xf32>
    %45 = vector.extract %44[0, 0, 0] : f32 from vector<1x1x1xf32>
    %46 = arith.mulf %19, %19 : vector<16x128xf32>
    %47 = arith.mulf %46, %31 : vector<16x128xf32>
    %48 = vector.shape_cast %47 : vector<16x128xf32> to vector<1x16x128xf32>
    %cst_10 = arith.constant dense<0.000000e+00> : vector<1xf32>
    %49 = vector.multi_reduction <add>, %48, %cst_10 [1, 2] : vector<1x16x128xf32> to vector<1xf32>
    %50 = vector.shape_cast %49 : vector<1xf32> to vector<1x1x1xf32>
    %51 = vector.extract %50[0, 0, 0] : f32 from vector<1x1x1xf32>
    %52 = math.absf %39 : vector<16x128xf32>
    %53 = arith.mulf %52, %31 : vector<16x128xf32>
    %54 = vector.shape_cast %53 : vector<16x128xf32> to vector<1x16x128xf32>
    %cst_11 = arith.constant dense<0.000000e+00> : vector<1xf32>
    %55 = vector.multi_reduction <add>, %54, %cst_11 [1, 2] : vector<1x16x128xf32> to vector<1xf32>
    %56 = vector.shape_cast %55 : vector<1xf32> to vector<1x1x1xf32>
    %57 = vector.extract %56[0, 0, 0] : f32 from vector<1x1x1xf32>
    %58 = tpu.iota {dimensions = array<i32: 0>} : vector<8x128xi32>
    %c0_i32 = arith.constant 0 : i32
    %59 = vector.broadcast %c0_i32 : i32 to vector<8x128xi32>
    %60 = arith.cmpi eq, %58, %59 : vector<8x128xi32>
    %61 = arith.extui %60 : vector<8x128xi1> to vector<8x128xi32>
    %62 = arith.sitofp %61 : vector<8x128xi32> to vector<8x128xf32>
    %63 = vector.broadcast %45 : f32 to vector<8x128xf32>
    %64 = arith.mulf %63, %62 : vector<8x128xf32>
    %c1_i32 = arith.constant 1 : i32
    %65 = vector.broadcast %c1_i32 : i32 to vector<8x128xi32>
    %66 = arith.cmpi eq, %58, %65 : vector<8x128xi32>
    %67 = arith.extui %66 : vector<8x128xi1> to vector<8x128xi32>
    %68 = arith.sitofp %67 : vector<8x128xi32> to vector<8x128xf32>
    %69 = vector.broadcast %51 : f32 to vector<8x128xf32>
    %70 = arith.mulf %69, %68 : vector<8x128xf32>
    %71 = arith.addf %64, %70 : vector<8x128xf32>
    %c2_i32 = arith.constant 2 : i32
    %72 = vector.broadcast %c2_i32 : i32 to vector<8x128xi32>
    %73 = arith.cmpi eq, %58, %72 : vector<8x128xi32>
    %74 = arith.extui %73 : vector<8x128xi1> to vector<8x128xi32>
    %75 = arith.sitofp %74 : vector<8x128xi32> to vector<8x128xf32>
    %76 = vector.broadcast %57 : f32 to vector<8x128xf32>
    %77 = arith.mulf %76, %75 : vector<8x128xf32>
    %78 = arith.addf %71, %77 : vector<8x128xf32>
    %79 = vector.shape_cast %78 : vector<8x128xf32> to vector<1x1x8x128xf32>
    %c0_12 = arith.constant 0 : index
    %c0_13 = arith.constant 0 : index
    %c0_14 = arith.constant 0 : index
    %c0_15 = arith.constant 0 : index
    %80 = vector.load %arg4[%c0_12, %c0_13, %c0_14, %c0_15] : memref<1x1x8x128xf32, #tpu.memory_space<vmem>>, vector<1x1x8x128xf32>
    tpu.vector_store %arg4[%c0_12, %c0_13, %c0_14, %c0_15], %79 {strides = array<i32>} : memref<1x1x8x128xf32, #tpu.memory_space<vmem>>, vector<1x1x8x128xf32>,
    return
  }
  func.func @transform_0(%arg0: i32, %arg1: i32) -> (i32, i32, i32, i32) {
    %c0_i32 = arith.constant 0 : i32
    %c0_i32_0 = arith.constant 0 : i32
    %c0_i32_1 = arith.constant 0 : i32
    return %arg0, %arg1, %c0_i32, %c0_i32_0 : i32, i32, i32, i32
  }
  func.func @transform_1(%arg0: i32, %arg1: i32) -> (i32, i32) {
    %c0_i32 = arith.constant 0 : i32
    %c0_i32_0 = arith.constant 0 : i32
    %c0_i32_1 = arith.constant 0 : i32
    return %c0_i32, %c0_i32_0 : i32, i32
  }
  func.func @transform_2(%arg0: i32, %arg1: i32) -> (i32, i32, i32, i32) {
    %c0_i32 = arith.constant 0 : i32
    %c0_i32_0 = arith.constant 0 : i32
    %c0_i32_1 = arith.constant 0 : i32
    return %arg0, %arg1, %c0_i32, %c0_i32_0 : i32, i32, i32, i32
  }
}

</mosaic_0001>

<llo_original>
// kernel: tpu_custom_call.1
$region0: #{tpu_custom_call.1}
  #allocation0 [shape = 'u32[]', space=smem, size = 0x4, offset = 0x4, fixed_abs, tag = 'smem constant byte address 0x4 - core index']
  #allocation1 [shape = 'u32[144,128]{1,0:T(1,128)}', space=vmem, size = 0x12000, scoped, tag = 'internal scratch']
  %s0 = inlined_call_operand.hbm [shape: f32[4,1,32,128], index: 0, kind: input, shape index: {}]
  %s1 = inlined_call_operand.hbm [shape: f32[128,256], index: 1, kind: input, shape index: {}]
  %s2 = inlined_call_operand.hbm [shape: f32[4,1,8,128], index: 2, kind: output, shape index: {}]
  %s3 = sld [smem:[#allocation0]]
  $region49: #{tpu_custom_call.1} parent=0
    _
  %s5 = ssub.s32 1, %s3
  %s6 = scalar_select 0, %s5, %s3
  $region1: #{tpu_custom_call.1} parent=0
    #allocation2 [shape = 'u8[32768]{0}', space=vmem, size = 0x8000, scoped, tag = 'input window, operand 0']
    #allocation3 [shape = 's32[2]{0}', space=sflag, size = 0x8, scoped, tag = 'scoped memory for tpu_custom_call.1']
    #allocation4 [shape = 's32[2]{0}', space=sflag, size = 0x8, scoped, tag = 'scoped memory for tpu_custom_call.1']
    #allocation5 [shape = 'u8[131072]{0}', space=vmem, size = 0x20000, scoped, tag = 'input window, operand 1, single buffered']
    #allocation6 [shape = 's32[1]{0}', space=sflag, size = 0x4, scoped, tag = 'scoped memory for tpu_custom_call.1']
    #allocation7 [shape = 'u8[8192]{0}', space=vmem, size = 0x2000, scoped, tag = 'output window, operand 0']
    %7 = vsyncpa [#allocation3], 0
    %s8 = scalar_lea.sflag [#allocation3], 1
    %9 = vsyncpa %s8, 0
    %10 = vsyncpa [#allocation6], 0
    %11 = vsyncpa [#allocation4], 0
    %s12 = scalar_lea.sflag [#allocation4], 1
    %13 = vsyncpa %s12, 0
    loop: start=0, step=1, limit=6
    $region2: #{tpu_custom_call.1} parent=1 // loop_pre_header
      _
    $region3: #{tpu_custom_call.1} parent=1 // loop_header
      %s15 = sphi 0, %s19
      %p16 = scmp.ge.s32.totalorder %s15, 6
      %s22 = sphi 0, %s34
      %s23 = sphi 0, %s30
      %s24 = sphi 0, %s22
      %s25 = sphi 0, %s23
      %s26 = sphi 0, %s24
      %s27 = sphi 0, %s25
      %s39 = sphi 0, %s41
      %s42 = sphi 0, %s39
      %s43 = sphi 0, %s42
      %s59 = sphi 0, %s43
      %s63 = sphi 0, %s63
      %s65 = sphi 0, %s63
      %s66 = sphi 0, %s65
      %s80 = sphi 0, %s66
      %s88 = sphi 0, %s90
      %s91 = sphi 0, %s88
      %s92 = sphi 0, %s91
      %s108 = sphi 0, %s92
    $region4: #{tpu_custom_call.1} parent=1 // loop_header_branch
      %18 = sbr.rel (%p16) target = $region8
    $region5: #{tpu_custom_call.1} parent=1 // loop_body
      %s20 = ssub.s32 %s15, 1
      %s21 = ssub.s32 %s15, 2
      %s28 = sadd.s32 1, %s23
      %p29 = scmp.ge.s32.totalorder %s28, 1
      %s30 = scalar_select %p29, 0, %s28
      %s31 = sadd.s32 1, %s22
      %s32 = scalar_select %p29, %s31, %s22
      %p33 = scmp.ge.s32.totalorder %s32, 4
      %s34 = scalar_select %p33, 0, %s32
      %s35 = ssub.s32 %s22, %s34
      %s36 = ssub.s32 %s23, %s30
      %s37 = sor.u32 %s35, %s36
      %p38 = scmp.eq.s32.totalorder %s37, 0
      %s40 = sadd.s32 %s39, 1
      %s41 = scalar_select %p38, %s39, %s40
      %p44 = pneg %p38
      %p45 = scmp.eq.s32.totalorder %s15, 3
      %p46 = por %p44, %p45
      %p47 = scmp.ne.s32.totalorder %s39, %s42
      %p48 = scmp.eq.s32.totalorder %s15, 0
      %p49 = por %p47, %p48
      %p50 = scmp.ne.s32.totalorder %s39, %s42
      %p51 = scmp.eq.s32.totalorder %s20, 3
      %p52 = por %p50, %p51
      %p53 = scmp.ne.s32.totalorder %s42, %s43
      %p54 = scmp.eq.s32.totalorder %s20, 0
      %p55 = por %p53, %p54
      %p56 = scmp.ne.s32.totalorder %s42, %s43
      %p57 = scmp.eq.s32.totalorder %s21, 3
      %p58 = por %p56, %p57
      %p60 = scmp.ne.s32.totalorder %s43, %s59
      %p61 = scmp.eq.s32.totalorder %s21, 0
      %p62 = por %p60, %p61
      %s64 = sadd.s32 %s63, 1
      %p67 = scmp.eq.s32.totalorder %s15, 3
      %p68 = scmp.ne.s32.totalorder %s63, %s65
      %p69 = scmp.eq.s32.totalorder %s15, 0
      %p70 = por %p68, %p69
      %p71 = scmp.ne.s32.totalorder %s63, %s65
      %p72 = scmp.eq.s32.totalorder %s20, 3
      %p73 = por %p71, %p72
      %p74 = scmp.ne.s32.totalorder %s65, %s66
      %p75 = scmp.eq.s32.totalorder %s20, 0
      %p76 = por %p74, %p75
      %p77 = scmp.ne.s32.totalorder %s65, %s66
      %p78 = scmp.eq.s32.totalorder %s21, 3
      %p79 = por %p77, %p78
      %p81 = scmp.ne.s32.totalorder %s66, %s80
      %p82 = scmp.eq.s32.totalorder %s21, 0
      %p83 = por %p81, %p82
      %s84 = ssub.s32 %s22, %s34
      %s85 = ssub.s32 %s23, %s30
      %s86 = sor.u32 %s84, %s85
      %p87 = scmp.eq.s32.totalorder %s86, 0
      %s89 = sadd.s32 %s88, 1
      %s90 = scalar_select %p87, %s88, %s89
      %p93 = pneg %p87
      %p94 = scmp.eq.s32.totalorder %s15, 3
      %p95 = por %p93, %p94
      %p96 = scmp.ne.s32.totalorder %s88, %s91
      %p97 = scmp.eq.s32.totalorder %s15, 0
      %p98 = por %p96, %p97
      %p99 = scmp.ne.s32.totalorder %s88, %s91
      %p100 = scmp.eq.s32.totalorder %s20, 3
      %p101 = por %p99, %p100
      %p102 = scmp.ne.s32.totalorder %s91, %s92
      %p103 = scmp.eq.s32.totalorder %s20, 0
      %p104 = por %p102, %p103
      %p105 = scmp.ne.s32.totalorder %s91, %s92
      %p106 = scmp.eq.s32.totalorder %s21, 3
      %p107 = por %p105, %p106
      %p109 = scmp.ne.s32.totalorder %s92, %s108
      %p110 = scmp.eq.s32.totalorder %s21, 0
      %p111 = por %p109, %p110
      %p112 = scmp.le.s32.totalorder 1, %s15
      %p113 = scmp.lt.s32.totalorder %s15, 5
      %p114 = pnand %p112, %p113
      %p115 = pneg %p114
      // Predicated region
      $region9: #{tpu_custom_call.1} parent=5 // pred_check
        _
      $region10: #{tpu_custom_call.1} parent=5 // pred_check_branch
        %117 = sbr.rel (%p114) target = $region12
      $region11: #{tpu_custom_call.1} parent=5 // pred_region
        %s118 = ssub.s32 %s15, 1
        // Predicated region
        $region13: #{tpu_custom_call.1} parent=11 // pred_check
          %p119 = pneg %p76
        $region14: #{tpu_custom_call.1} parent=11 // pred_check_branch
          %121 = sbr.rel (%p119) target = $region16
        $region15: #{tpu_custom_call.1} parent=11 // pred_region
          %s123 = ssub.s32 4096, 4096
          %124 = vsyncadd [#allocation6], %s123
          %s125 = sshll.u32 [#allocation5], 4
          %s126 = int_to_ptr.vmem [resolvable:$true] %s125
          %131 = dma.hbm_to_vmem [thread:$0]  %s1, 4096, %s126, [#allocation6], 256, 256, 16
        $region16: #{tpu_custom_call.1} parent=11 // pred_fallthru
          _
      $region12: #{tpu_custom_call.1} parent=5 // pred_fallthru
        _
      %p132 = scmp.lt.s32.totalorder %s15, 4
      // Predicated region
      $region17: #{tpu_custom_call.1} parent=5 // pred_check
        %p133 = pneg %p132
      $region18: #{tpu_custom_call.1} parent=5 // pred_check_branch
        %135 = sbr.rel (%p133) target = $region20
      $region19: #{tpu_custom_call.1} parent=5 // pred_region
        // Predicated region
        $region21: #{tpu_custom_call.1} parent=19 // pred_check
          %p136 = pneg %p49
        $region22: #{tpu_custom_call.1} parent=19 // pred_check_branch
          %138 = sbr.rel (%p136) target = $region24
        $region23: #{tpu_custom_call.1} parent=19 // pred_region
          %s139 = sand.u32 %s39, 1
          %s140 = scalar_lea.sflag [#allocation3], %s139
          %s141 = sand.u32 %s39, 1
          %s142 = smul.addr %s141, 32
          %s143 = scalar_lea.vmem [#allocation2], %s142
          %s145 = ssub.s32 512, 512
          %146 = vsyncadd %s140, %s145
          %s147 = smul.addr %s23, 4
          %s148 = smul.addr %s22, 4
          %s149 = sadd.s32 %s147, %s148
          %s150 = smul.addr %s149, 128
          %s151 = scalar_lea.hbm %s0, %s150
          %s152 = sshll.u32 %s143, 4
          %s153 = int_to_ptr.vmem [resolvable:$true] %s152
          %158 = dma.hbm_to_vmem [thread:$0]  %s151, 512, %s153, %s140, 128, 128, 8
        $region24: #{tpu_custom_call.1} parent=19 // pred_fallthru
          _
      $region20: #{tpu_custom_call.1} parent=5 // pred_fallthru
        _
      %p159 = scmp.le.s32.totalorder 1, %s15
      %p160 = scmp.lt.s32.totalorder %s15, 5
      %p161 = pnand %p159, %p160
      %p162 = pneg %p161
      // Predicated region
      $region25: #{tpu_custom_call.1} parent=5 // pred_check
        _
      $region26: #{tpu_custom_call.1} parent=5 // pred_check_branch
        %164 = sbr.rel (%p161) target = $region28
      $region27: #{tpu_custom_call.1} parent=5 // pred_region
        %s165 = ssub.s32 %s15, 1
        %s166 = sand.u32 %s42, 1
        %s167 = scalar_lea.sflag [#allocation3], %s166
        %s168 = sand.u32 %s42, 1
        %s169 = smul.addr %s168, 32
        %s170 = scalar_lea.vmem [#allocation2], %s169
        // Predicated region
        $region29: #{tpu_custom_call.1} parent=27 // pred_check
          %p171 = pneg %p55
        $region30: #{tpu_custom_call.1} parent=27 // pred_check_branch
          %173 = sbr.rel (%p171) target = $region32
        $region31: #{tpu_custom_call.1} parent=27 // pred_region
          %174 = dma.done %s167, 512
        $region32: #{tpu_custom_call.1} parent=27 // pred_fallthru
          _
        // Predicated region
        $region33: #{tpu_custom_call.1} parent=27 // pred_check
          %p175 = pneg %p76
        $region34: #{tpu_custom_call.1} parent=27 // pred_check_branch
          %177 = sbr.rel (%p175) target = $region36
        $region35: #{tpu_custom_call.1} parent=27 // pred_region
          %178 = dma.done [#allocation6], 4096
        $region36: #{tpu_custom_call.1} parent=27 // pred_fallthru
          _
        %s179 = sand.u32 %s42, 1
        %s180 = scalar_lea.sflag [#allocation3], %s179
        %s181 = sand.u32 %s42, 1
        %s182 = smul.addr %s181, 32
        %s183 = scalar_lea.vmem [#allocation2], %s182
        %p184 = pneg %p55
        %p185 = pneg %p52
        %p186 = pneg %p76
        %p187 = pneg %p73
        %p188 = pneg %p104
        %p189 = pneg %p101
        %s190 = sand.u32 %s91, 1
        %s191 = scalar_lea.sflag [#allocation4], %s190
        %s192 = sand.u32 %s91, 1
        %s193 = smul.addr %s192, 8
        %s194 = scalar_lea.vmem [#allocation7], %s193
        %v195 = vld [vmem:[%s170] sm:$0xff]
        %v196 = vld [vmem:[%s170 + $0x8] sm:$0xff]
        %v197 = vld [vmem:[%s170 + $0x10] sm:$0xff]
        %v198 = vld [vmem:[%s170 + $0x18] sm:$0xff]
        %v199 = vld [vmem:[#allocation5] sm:$0xff]
        %v200 = vld [vmem:[#allocation5 + $0x8] sm:$0xff]
        %v201 = vld [vmem:[#allocation5 + $0x10] sm:$0xff]
        %v202 = vld [vmem:[#allocation5 + $0x18] sm:$0xff]
        %v203 = vld [vmem:[#allocation5 + $0x20] sm:$0xff]
        %v204 = vld [vmem:[#allocation5 + $0x28] sm:$0xff]
        %v205 = vld [vmem:[#allocation5 + $0x30] sm:$0xff]
        %v206 = vld [vmem:[#allocation5 + $0x38] sm:$0xff]
        %v207 = vld [vmem:[#allocation5 + $0x40] sm:$0xff]
        %v208 = vld [vmem:[#allocation5 + $0x48] sm:$0xff]
        %v209 = vld [vmem:[#allocation5 + $0x50] sm:$0xff]
        %v210 = vld [vmem:[#allocation5 + $0x58] sm:$0xff]
        %v211 = vld [vmem:[#allocation5 + $0x60] sm:$0xff]
        %v212 = vld [vmem:[#allocation5 + $0x68] sm:$0xff]
        %v213 = vld [vmem:[#allocation5 + $0x70] sm:$0xff]
        %v214 = vld [vmem:[#allocation5 + $0x78] sm:$0xff]
        %v215 = vld [vmem:[#allocation5 + $0x80] sm:$0xff]
        %v216 = vld [vmem:[#allocation5 + $0x88] sm:$0xff]
        %v217 = vld [vmem:[#allocation5 + $0x90] sm:$0xff]
        %v218 = vld [vmem:[#allocation5 + $0x98] sm:$0xff]
        %v219 = vld [vmem:[#allocation5 + $0xa0] sm:$0xff]
        %v220 = vld [vmem:[#allocation5 + $0xa8] sm:$0xff]
        %v221 = vld [vmem:[#allocation5 + $0xb0] sm:$0xff]
        %v222 = vld [vmem:[#allocation5 + $0xb8] sm:$0xff]
        %v223 = vld [vmem:[#allocation5 + $0xc0] sm:$0xff]
        %v224 = vld [vmem:[#allocation5 + $0xc8] sm:$0xff]
        %v225 = vld [vmem:[#allocation5 + $0xd0] sm:$0xff]
        %v226 = vld [vmem:[#allocation5 + $0xd8] sm:$0xff]
        %v227 = vld [vmem:[#allocation5 + $0xe0] sm:$0xff]
        %v228 = vld [vmem:[#allocation5 + $0xe8] sm:$0xff]
        %v229 = vld [vmem:[#allocation5 + $0xf0] sm:$0xff]
        %v230 = vld [vmem:[#allocation5 + $0xf8] sm:$0xff]
        %231 = vmatprep.subr.mxu0 %v200
        %232 = vmatpush1.msra.mxu0 %v199
        %233 = vmatprep.subr.mxu0 %v202
        %234 = vmatpush1.msra.mxu0 %v201
        %235 = vmatprep.subr.mxu0 %v204
        %236 = vmatpush1.msra.mxu0 %v203
        %237 = vmatprep.subr.mxu0 %v206
        %238 = vmatpush1.msra.mxu0 %v205
        %239 = vmatprep.subr.mxu0 %v208
        %240 = vmatpush1.msra.mxu0 %v207
        %241 = vmatprep.subr.mxu0 %v210
        %242 = vmatpush1.msra.mxu0 %v209
        %243 = vmatprep.subr.mxu0 %v212
        %244 = vmatpush1.msra.mxu0 %v211
        %245 = vmatprep.subr.mxu0 %v214
        %246 = vmatpush1.msra.mxu0 %v213
        %247 = vmatprep.subr.mxu0 %v216
        %248 = vmatpush1.msra.mxu0 %v215
        %249 = vmatprep.subr.mxu0 %v218
        %250 = vmatpush1.msra.mxu0 %v217
        %251 = vmatprep.subr.mxu0 %v220
        %252 = vmatpush1.msra.mxu0 %v219
        %253 = vmatprep.subr.mxu0 %v222
        %254 = vmatpush1.msra.mxu0 %v221
        %255 = vmatprep.subr.mxu0 %v224
        %256 = vmatpush1.msra.mxu0 %v223
        %257 = vmatprep.subr.mxu0 %v226
        %258 = vmatpush1.msra.mxu0 %v225
        %259 = vmatprep.subr.mxu0 %v228
        %260 = vmatpush1.msra.mxu0 %v227
        %261 = vmatprep.subr.mxu0 %v230
        %262 = vmatpush1.msra.mxu0 %v229
        %263 = vmatprep.subr.mxu0 0.0
        %264 = vmatpush1.msra.mxu0 0.0
        %265 = vmatprep.subr.mxu0 0.0
        %266 = vmatpush1.msra.mxu0 0.0
        %267 = vmatprep.subr.mxu0 0.0
        %268 = vmatpush1.msra.mxu0 0.0
        %269 = vmatprep.subr.mxu0 0.0
        %270 = vmatpush1.msra.mxu0 0.0
        %271 = vmatprep.subr.mxu0 0.0
        %272 = vmatpush1.msra.mxu0 0.0
        %273 = vmatprep.subr.mxu0 0.0
        %274 = vmatpush1.msra.mxu0 0.0
        %275 = vmatprep.subr.mxu0 0.0
        %276 = vmatpush1.msra.mxu0 0.0
        %277 = vmatprep.subr.mxu0 0.0
        %278 = vmatpush1.msra.mxu0 0.0
        %279 = vmatprep.subr.mxu0 0.0
        %280 = vmatpush1.msra.mxu0 0.0
        %281 = vmatprep.subr.mxu0 0.0
        %282 = vmatpush1.msra.mxu0 0.0
        %283 = vmatprep.subr.mxu0 0.0
        %284 = vmatpush1.msra.mxu0 0.0
        %285 = vmatprep.subr.mxu0 0.0
        %286 = vmatpush1.msra.mxu0 0.0
        %287 = vmatprep.subr.mxu0 0.0
        %288 = vmatpush1.msra.mxu0 0.0
        %289 = vmatprep.subr.mxu0 0.0
        %290 = vmatpush1.msra.mxu0 0.0
        %291 = vmatprep.subr.mxu0 0.0
        %292 = vmatpush1.msra.mxu0 0.0
        %293 = vmatprep.subr.mxu0 0.0
        %294 = vmatpush1.msra.mxu0 0.0
        %295 = vmatprep.mubr.f32.mxu0 0.0
        %296 = vmatmul.mubr.f32.gmra.mrb[0].mxu0 %v195
        %v297 = vpop.f32.mrb[0].mxu0
        %v298 = vadd.f32 0.0, %v297
        %v299 = vpop.f32.mrb[0].mxu0
        %v300 = vadd.f32 0.0, %v299
        %301 = vmatprep.mubr.f32.mxu0 0.0
        %302 = vmatmul.mubr.f32.gmra.mrb[0].mxu0 %v196
        %v303 = vpop.f32.mrb[0].mxu0
        %v304 = vadd.f32 0.0, %v303
        %v305 = vpop.f32.mrb[0].mxu0
        %v306 = vadd.f32 0.0, %v305
        %307 = vmatprep.mubr.f32.mxu0 0.0
        %308 = vmatmul.mubr.f32.gmra.mrb[0].mxu0 %v197
        %v309 = vpop.f32.mrb[0].mxu0
        %v310 = vadd.f32 0.0, %v309
        %v311 = vpop.f32.mrb[0].mxu0
        %v312 = vadd.f32 0.0, %v311
        %313 = vmatprep.mubr.f32.mxu0 0.0
        %314 = vmatmul.mubr.f32.gmra.mrb[0].mxu0 %v198
        %v315 = vpop.f32.mrb[0].mxu0
        %v316 = vadd.f32 0.0, %v315
        %v317 = vpop.f32.mrb[0].mxu0
        %v318 = vadd.f32 0.0, %v317
        %319 = vdwg.mxu0
        %v320 = vmul.f32 %v298, %v298
        %v321 = vmul.f32 %v304, %v304
        %v322 = vmul.f32 %v300, %v300
        %v323 = vmul.f32 %v306, %v306
        %v324 = vadd.f32 %v320, %v322
        %v325 = vadd.f32 %v321, %v323
        %v326 = vmax.f32 %v324, 1e-07
        %v327 = vmax.f32 %v325, 1e-07
        %v328 = vrsqrt.pop %v326
        %v329 = vmul.f32 %v326, %v328
        %vm330 = vcmp.eq.f32.partialorder %v326, inf
        %v331 = vsel %vm330, %v326, %v329
        %vm332 = vcmp.eq.f32.partialorder %v326, 0.0
        %v333 = vand.u32 %v326, 2147483648
        %v334 = vsel %vm332, %v333, %v331
        %v335 = vrsqrt.pop %v327
        %v336 = vmul.f32 %v327, %v335
        %vm337 = vcmp.eq.f32.partialorder %v327, inf
        %v338 = vsel %vm337, %v327, %v336
        %vm339 = vcmp.eq.f32.partialorder %v327, 0.0
        %v340 = vand.u32 %v327, 2147483648
        %v341 = vsel %vm339, %v340, %v338
        %v342 = vmul.f32 %v310, %v310
        %v343 = vmul.f32 %v316, %v316
        %v344 = vmul.f32 %v312, %v312
        %v345 = vmul.f32 %v318, %v318
        %v346 = vadd.f32 %v342, %v344
        %v347 = vadd.f32 %v343, %v345
        %v348 = vmax.f32 %v346, 1e-07
        %v349 = vmax.f32 %v347, 1e-07
        %v350 = vrsqrt.pop %v348
        %v351 = vmul.f32 %v348, %v350
        %vm352 = vcmp.eq.f32.partialorder %v348, inf
        %v353 = vsel %vm352, %v348, %v351
        %vm354 = vcmp.eq.f32.partialorder %v348, 0.0
        %v355 = vand.u32 %v348, 2147483648
        %v356 = vsel %vm354, %v355, %v353
        %v357 = vrsqrt.pop %v349
        %v358 = vmul.f32 %v349, %v357
        %vm359 = vcmp.eq.f32.partialorder %v349, inf
        %v360 = vsel %vm359, %v349, %v358
        %vm361 = vcmp.eq.f32.partialorder %v349, 0.0
        %v362 = vand.u32 %v349, 2147483648
        %v363 = vsel %vm361, %v362, %v360
        %v364 = vlaneseq
        %v365 = vand.u32 %v364, 127
        %v366 = vlaneseq
        %v367 = vshrl.u32 %v366, 7
        %v368 = vadd.s32 %v367, 8
        %s369 = smul.u32 %s25, 16
        %v370 = vstv %s369
        %v371 = vadd.s32 %v367, %v370
        %v372 = vadd.s32 %v368, %v370
        %vm373 = vcmp.lt.s32.totalorder %v365, 65
        %vm374 = vcmp.lt.s32.totalorder %v371, 9
        %vm375 = vcmp.lt.s32.totalorder %v372, 9
        %vm376 = vmand %vm373, %vm374
        %vm377 = vmand %vm373, %vm375
        %v378 = vsel %vm376, 1, 0
        %v379 = vsel %vm377, 1, 0
        %v380 = vcvt.s32.f32 %v378
        %v381 = vcvt.s32.f32 %v379
        %v382 = vsub.f32 %v356, %v334
        %v383 = vsub.f32 %v363, %v341
        %v384 = vadd.f32 %v356, 1.1920929e-07
        %v385 = vadd.f32 %v363, 1.1920929e-07
        %v386 = vadd.f32 %v334, 1.1920929e-07
        %v387 = vadd.f32 %v341, 1.1920929e-07
        %v388 = vrcp.pop %v386
        %v389 = vrcp.pop %v387
        %v390 = vmul.f32 %v384, %v388
        %v391 = vmul.f32 %v385, %v389
        %v392 = vlog2.pop %v390
        %v393 = vmul.f32 %v392, 0.6931472
        %v394 = vlog2.pop %v391
        %v395 = vmul.f32 %v394, 0.6931472
        %v396 = vmul.f32 %v382, %v382
        %v397 = vmul.f32 %v383, %v383
        %v398 = vmul.f32 %v396, %v380
        %v399 = vmul.f32 %v397, %v381
        %v400 = vadd.f32 %v398, %v399
        %401 = vadd.xlane.f32.xlu0 %v400
        %v402 = vpop.xlane.xlu0 %401
        %v403 = vrot.slane %v402, 4
        %v404 = vadd.f32 %v402, %v403
        %v405 = vrot.slane %v404, 2
        %v406 = vadd.f32 %v404, %v405
        %v407 = vrot.slane %v406, 1
        %v408 = vadd.f32 %v406, %v407
        %s409 = vtos %v408
        %v410 = vmul.f32 %v356, %v356
        %v411 = vmul.f32 %v363, %v363
        %v412 = vmul.f32 %v410, %v380
        %v413 = vmul.f32 %v411, %v381
        %v414 = vadd.f32 %v412, %v413
        %415 = vadd.xlane.f32.xlu0 %v414
        %v416 = vpop.xlane.xlu0 %415
        %v417 = vrot.slane %v416, 4
        %v418 = vadd.f32 %v416, %v417
        %v419 = vrot.slane %v418, 2
        %v420 = vadd.f32 %v418, %v419
        %v421 = vrot.slane %v420, 1
        %v422 = vadd.f32 %v420, %v421
        %s423 = vtos %v422
        %v424 = vand.u32 2147483647, %v393
        %v425 = vand.u32 2147483647, %v395
        %v426 = vmul.f32 %v424, %v380
        %v427 = vmul.f32 %v425, %v381
        %v428 = vadd.f32 %v426, %v427
        %429 = vadd.xlane.f32.xlu0 %v428
        %v430 = vpop.xlane.xlu0 %429
        %v431 = vrot.slane %v430, 4
        %v432 = vadd.f32 %v430, %v431
        %v433 = vrot.slane %v432, 2
        %v434 = vadd.f32 %v432, %v433
        %v435 = vrot.slane %v434, 1
        %v436 = vadd.f32 %v434, %v435
        %s437 = vtos %v436
        %vm438 = vcmp.eq.s32.totalorder %v367, 0
        %v439 = vsel %vm438, 1, 0
        %v440 = vcvt.s32.f32 %v439
        %v441 = vstv %s409
        %v442 = vmul.f32 %v441, %v440
        %vm443 = vcmp.eq.s32.totalorder %v367, 1
        %v444 = vsel %vm443, 1, 0
        %v445 = vcvt.s32.f32 %v444
        %v446 = vstv %s423
        %v447 = vmul.f32 %v446, %v445
        %v448 = vadd.f32 %v442, %v447
        %vm449 = vcmp.eq.s32.totalorder %v367, 2
        %v450 = vsel %vm449, 1, 0
        %v451 = vcvt.s32.f32 %v450
        %v452 = vstv %s437
        %v453 = vmul.f32 %v452, %v451
        %v454 = vadd.f32 %v448, %v453
        %455 = vst [vmem:[%s194] sm:$0xff] %v454
        %s456 = sand.u32 %s91, 1
        %s457 = scalar_lea.sflag [#allocation4], %s456
        %s458 = sand.u32 %s91, 1
        %s459 = smul.addr %s458, 8
        %s460 = scalar_lea.vmem [#allocation7], %s459
        // Predicated region
        $region37: #{tpu_custom_call.1} parent=27 // pred_check
          %p461 = pneg %p101
        $region38: #{tpu_custom_call.1} parent=27 // pred_check_branch
          %463 = sbr.rel (%p461) target = $region40
        $region39: #{tpu_custom_call.1} parent=27 // pred_region
          %s465 = ssub.s32 128, 128
          %466 = vsyncadd %s457, %s465
          %s467 = sadd.s32 %s25, %s24
          %s468 = smul.addr %s467, 128
          %s469 = scalar_lea.hbm %s2, %s468
          %s471 = sshll.u32 %s460, 4
          %s472 = int_to_ptr.vmem [resolvable:$true] %s471
          %474 = dma.vmem_to_hbm [thread:$0]  %s472, 128, %s469, %s457
        $region40: #{tpu_custom_call.1} parent=27 // pred_fallthru
          _
      $region28: #{tpu_custom_call.1} parent=5 // pred_fallthru
        _
      %p475 = scmp.le.s32.totalorder 2, %s15
      // Predicated region
      $region41: #{tpu_custom_call.1} parent=5 // pred_check
        %p476 = pneg %p475
      $region42: #{tpu_custom_call.1} parent=5 // pred_check_branch
        %478 = sbr.rel (%p476) target = $region44
      $region43: #{tpu_custom_call.1} parent=5 // pred_region
        %s479 = ssub.s32 %s15, 2
        // Predicated region
        $region45: #{tpu_custom_call.1} parent=43 // pred_check
          %p480 = pneg %p107
        $region46: #{tpu_custom_call.1} parent=43 // pred_check_branch
          %482 = sbr.rel (%p480) target = $region48
        $region47: #{tpu_custom_call.1} parent=43 // pred_region
          %s483 = sand.u32 %s92, 1
          %s484 = scalar_lea.sflag [#allocation4], %s483
          %s485 = sand.u32 %s92, 1
          %s486 = smul.addr %s485, 8
          %s487 = scalar_lea.vmem [#allocation7], %s486
          %488 = dma.done %s484, 128
        $region48: #{tpu_custom_call.1} parent=43 // pred_fallthru
          _
      $region44: #{tpu_custom_call.1} parent=5 // pred_fallthru
        _
    $region6: #{tpu_custom_call.1} parent=1 // loop_footer
      %s19 = sadd.s32 1, %s15
    $region7: #{tpu_custom_call.1} parent=1 // loop_footer_branch
      %14 = sbr.rel target = $region3
    $region8: #{tpu_custom_call.1} parent=1 // loop_exit
      _
    %489 = vsyncpa [#allocation3], 1
    %s490 = scalar_lea.sflag [#allocation3], 1
    %491 = vsyncpa %s490, 1
    %492 = vsyncpa [#allocation6], 1
    %493 = vsyncpa [#allocation4], 1
    %s494 = scalar_lea.sflag [#allocation4], 1
    %495 = vsyncpa %s494, 1

</llo_original>
